<compile_context>
chip_gen: v7x
topology: tpu7x:2x2x1
jax: 0.10.0
libtpu: 0.0.40
codegen_flags: <defaults>
</compile_context>

<pallas_src>
import jax
import jax.numpy as jnp
from jax.experimental import pallas as pl
from jax.experimental.pallas import tpu as pltpu

IN_CHANNELS = 13
OUT_CHANNELS = 3


def _conv1x1_kernel(x_ref, w_ref, b_ref, o_ref):
    # x_ref: (C_in, TP)   pixels in lanes
    # w_ref: (C_out, C_in)
    # b_ref: (C_out, 1)
    # o_ref: (C_out, TP)
    acc = jnp.dot(w_ref[...], x_ref[...], preferred_element_type=jnp.float32)
    o_ref[...] = (acc + b_ref[...]).astype(o_ref.dtype)


def msi_embedder1_forward(x_nchw, weight, bias, *, tile_p=8192):
    """1x1 conv forward.

    Args:
      x_nchw: (N, C_in, H, W) float32
      weight: (C_out, C_in, 1, 1) float32 (PyTorch Conv2d OIHW layout)
      bias:   (C_out,) float32
    Returns:
      (N, C_out, H, W) float32
    """
    n, c_in, h, w = x_nchw.shape
    c_out = weight.shape[0]
    p = h * w

    # Free reshapes only (contiguous), no transposes / padding / copies.
    x_flat = x_nchw.reshape(n, c_in, p)          # (N, C_in, P)
    w_mat = weight.reshape(c_out, c_in)          # (C_out, C_in)
    b_col = bias.reshape(c_out, 1)               # (C_out, 1), lane-broadcast in kernel

    # Lane-dense pixel tile: large multiple of 128. If P isn't a multiple of 128,
    # fall back to a full-extent block (allowed by the (8,128) rule).
    if p % 128 == 0:
        tp = min(tile_p, p)
        tp = max(128, (tp // 128) * 128)
    else:
        tp = p
    grid = (n, pl.cdiv(p, tp))   # >= 2 steps for typical batches -> v7x 2-TC sharding

    # Advisory cost estimate so XLA can overlap this memory-bound call.
    flops = 2 * c_in * c_out * n * p
    bytes_accessed = 4 * (n * c_in * p + n * c_out * p + c_out * c_in + c_out)
    cost = pl.CostEstimate(flops=flops, transcendentals=0,
                           bytes_accessed=bytes_accessed)

    out_flat = pl.pallas_call(
        _conv1x1_kernel,
        out_shape=jax.ShapeDtypeStruct((n, c_out, p), x_nchw.dtype),
        grid_spec=pltpu.PrefetchScalarGridSpec(
            num_scalar_prefetch=0,
            grid=grid,
            in_specs=[
                # Batch dim squeezed; kernel sees (C_in, TP). Ragged last pixel
                # block is fine: each output pixel depends only on its own lanes.
                pl.BlockSpec((None, c_in, tp), lambda i, j: (i, 0, j)),
                pl.BlockSpec((c_out, c_in), lambda i, j: (0, 0)),
                pl.BlockSpec((c_out, 1), lambda i, j: (0, 0)),
            ],
            out_specs=pl.BlockSpec((None, c_out, tp), lambda i, j: (i, 0, j)),
        ),
        compiler_params=pltpu.CompilerParams(
            dimension_semantics=("parallel", "parallel")),
        cost_estimate=cost,
    )(x_flat, w_mat, b_col)

    return out_flat.reshape(n, c_out, h, w)


def init_params(key, in_channels, out_channels):
    # Deterministic init mimicking nn.Conv2d default (uniform in +-1/sqrt(fan_in)).
    k_w, k_b = jax.random.split(key)
    fan_in = in_channels * 1 * 1
    bound = 1.0 / jnp.sqrt(fan_in)
    weight = jax.random.uniform(
        k_w, (out_channels, in_channels, 1, 1), jnp.float32, -bound, bound)
    bias = jax.random.uniform(
        k_b, (out_channels,), jnp.float32, -bound, bound)
    return weight, bias


if __name__ == "__main__":
    key = jax.random.PRNGKey(0)
    k_x, k_p = jax.random.split(key)

    # Small shapes consistent with the module: batch=2, 13 spectral bands, 16x16.
    x = jax.random.normal(k_x, (2, IN_CHANNELS, 16, 16), jnp.float32)
    weight, bias = init_params(k_p, IN_CHANNELS, OUT_CHANNELS)

    out = msi_embedder1_forward(x, weight, bias)
    out = jax.block_until_ready(out)

    # Sanity check against a plain-JAX reference of the 1x1 conv.
    ref = jnp.einsum("nchw,oc->nohw", x, weight.reshape(OUT_CHANNELS, IN_CHANNELS))
    ref = ref + bias.reshape(1, OUT_CHANNELS, 1, 1)
    assert out.shape == (2, OUT_CHANNELS, 16, 16)
    assert jnp.allclose(out, ref, atol=1e-5, rtol=1e-5)

    print("KERNEL_OK")
</pallas_src>

<mosaic_0001>
module attributes {stable_mosaic.version = 11 : i64} {
  func.func @_conv1x1_kernel(%arg0: i32, %arg1: i32, %arg2: memref<1x13x256xf32, #tpu.memory_space<vmem>>, %arg3: memref<3x13xf32, #tpu.memory_space<vmem>>, %arg4: memref<3x1xf32, #tpu.memory_space<vmem>>, %arg5: memref<1x3x256xf32, #tpu.memory_space<vmem>>) attributes {dimension_semantics = [#tpu.dimension_semantics<parallel>, #tpu.dimension_semantics<parallel>], iteration_bounds = array<i64: 2, 1>, scalar_prefetch = 0 : i64, scratch_operands = 0 : i64, tpu.core_type = #tpu.core_type<tc>, window_params = [{transform_indices = @transform_0, window_bounds = array<i64: 1, 13, 256>}, {pipeline_mode = #tpu.pipeline_mode<synchronous>, transform_indices = @transform_1, window_bounds = array<i64: 3, 13>}, {pipeline_mode = #tpu.pipeline_mode<synchronous>, transform_indices = @transform_2, window_bounds = array<i64: 3, 1>}, {transform_indices = @transform_3, window_bounds = array<i64: 1, 3, 256>}]} {
    %c0 = arith.constant 0 : index
    %c0_0 = arith.constant 0 : index
    %0 = vector.load %arg3[%c0, %c0_0] : memref<3x13xf32, #tpu.memory_space<vmem>>, vector<3x13xf32>
    %c0_1 = arith.constant 0 : index
    %c0_2 = arith.constant 0 : index
    %c0_3 = arith.constant 0 : index
    %1 = vector.load %arg2[%c0_1, %c0_2, %c0_3] : memref<1x13x256xf32, #tpu.memory_space<vmem>>, vector<1x13x256xf32>
    %2 = vector.shape_cast %1 : vector<1x13x256xf32> to vector<13x256xf32>
    %cst = arith.constant dense<0.000000e+00> : vector<3x256xf32>
    %3 = tpu.matmul %0, %2, %cst {dimension_numbers = #tpu.dot_dimension_numbers<[1], [0], [0], [1], [0, 0, 1, 1], [], []>} : vector<3x13xf32>, vector<13x256xf32>, vector<3x256xf32> -> vector<3x256xf32>
    %c0_4 = arith.constant 0 : index
    %c0_5 = arith.constant 0 : index
    %4 = vector.load %arg4[%c0_4, %c0_5] : memref<3x1xf32, #tpu.memory_space<vmem>>, vector<3x1xf32>
    %5 = vector.broadcast %4 : vector<3x1xf32> to vector<3x256xf32>
    %6 = arith.addf %3, %5 : vector<3x256xf32>
    %c0_6 = arith.constant 0 : index
    %c0_7 = arith.constant 0 : index
    %c0_8 = arith.constant 0 : index
    %7 = vector.load %arg5[%c0_6, %c0_7, %c0_8] : memref<1x3x256xf32, #tpu.memory_space<vmem>>, vector<1x3x256xf32>
    %8 = vector.shape_cast %7 : vector<1x3x256xf32> to vector<3x256xf32>
    %9 = vector.shape_cast %6 : vector<3x256xf32> to vector<1x3x256xf32>
    tpu.vector_store %arg5[%c0_6, %c0_7, %c0_8], %9 {strides = array<i32>} : memref<1x3x256xf32, #tpu.memory_space<vmem>>, vector<1x3x256xf32>,
    return
  }
  func.func @transform_0(%arg0: i32, %arg1: i32) -> (i32, i32, i32) {
    %c0_i32 = arith.constant 0 : i32
    %c0_i32_0 = arith.constant 0 : i32
    return %arg0, %c0_i32, %arg1 : i32, i32, i32
  }
  func.func @transform_1(%arg0: i32, %arg1: i32) -> (i32, i32) {
    %c0_i32 = arith.constant 0 : i32
    %c0_i32_0 = arith.constant 0 : i32
    %c0_i32_1 = arith.constant 0 : i32
    return %c0_i32, %c0_i32_0 : i32, i32
  }
  func.func @transform_2(%arg0: i32, %arg1: i32) -> (i32, i32) {
    %c0_i32 = arith.constant 0 : i32
    %c0_i32_0 = arith.constant 0 : i32
    %c0_i32_1 = arith.constant 0 : i32
    return %c0_i32, %c0_i32_0 : i32, i32
  }
  func.func @transform_3(%arg0: i32, %arg1: i32) -> (i32, i32, i32) {
    %c0_i32 = arith.constant 0 : i32
    %c0_i32_0 = arith.constant 0 : i32
    return %arg0, %c0_i32, %arg1 : i32, i32, i32
  }
}

</mosaic_0001>

<llo_original>
// kernel: tpu_custom_call.1
$region0: #{tpu_custom_call.1}
  #allocation0 [shape = 'u32[]', space=smem, size = 0x4, offset = 0x4, fixed_abs, tag = 'smem constant byte address 0x4 - core index']
  #allocation1 [shape = 'u32[144,128]{1,0:T(1,128)}', space=vmem, size = 0x12000, scoped, tag = 'internal scratch']
  %s0 = inlined_call_operand.vmem [shape: f32[2,13,256], index: 0, kind: input, shape index: {}]
  %s1 = inlined_call_operand.vmem [shape: f32[3,13], index: 1, kind: input, shape index: {}]
  %s2 = inlined_call_operand.vmem [shape: f32[3,1], index: 2, kind: input, shape index: {}]
  %s3 = inlined_call_operand.vmem [shape: f32[2,3,256], index: 3, kind: output, shape index: {}]
  %s4 = sld [smem:[#allocation0]]
  $region45: #{tpu_custom_call.1} parent=0
    _
  %s6 = ssub.s32 1, %s4
  %s7 = scalar_select 0, %s6, %s4
  loop: start=0, step=1, limit=4
  $region2: #{tpu_custom_call.1} parent=0 // loop_pre_header
    _
  $region3: #{tpu_custom_call.1} parent=0 // loop_header
    %s9 = sphi 0, %s13
    %p10 = scmp.ge.s32.totalorder %s9, 4
    %s16 = sphi 0, %s28
    %s17 = sphi 0, %s24
    %s18 = sphi 0, %s16
    %s19 = sphi 0, %s17
    %s20 = sphi 0, %s18
    %s21 = sphi 0, %s19
    %s33 = sphi 0, %s35
    %s36 = sphi 0, %s33
    %s37 = sphi 0, %s36
    %s53 = sphi 0, %s37
    %s57 = sphi 0, %s57
    %s59 = sphi 0, %s57
    %s60 = sphi 0, %s59
    %s74 = sphi 0, %s60
    %s78 = sphi 0, %s78
    %s80 = sphi 0, %s78
    %s81 = sphi 0, %s80
    %s95 = sphi 0, %s81
    %s103 = sphi 0, %s105
    %s106 = sphi 0, %s103
    %s107 = sphi 0, %s106
    %s123 = sphi 0, %s107
  $region4: #{tpu_custom_call.1} parent=0 // loop_header_branch
    %12 = sbr.rel (%p10) target = $region8
  $region5: #{tpu_custom_call.1} parent=0 // loop_body
    %s14 = ssub.s32 %s9, 1
    %s15 = ssub.s32 %s9, 2
    %s22 = sadd.s32 1, %s17
    %p23 = scmp.ge.s32.totalorder %s22, 1
    %s24 = scalar_select %p23, 0, %s22
    %s25 = sadd.s32 1, %s16
    %s26 = scalar_select %p23, %s25, %s16
    %p27 = scmp.ge.s32.totalorder %s26, 2
    %s28 = scalar_select %p27, 0, %s26
    %s29 = ssub.s32 %s16, %s28
    %s30 = ssub.s32 %s17, %s24
    %s31 = sor.u32 %s29, %s30
    %p32 = scmp.eq.s32.totalorder %s31, 0
    %s34 = sadd.s32 %s33, 1
    %s35 = scalar_select %p32, %s33, %s34
    %p38 = pneg %p32
    %p39 = scmp.eq.s32.totalorder %s9, 1
    %p40 = por %p38, %p39
    %p41 = scmp.ne.s32.totalorder %s33, %s36
    %p42 = scmp.eq.s32.totalorder %s9, 0
    %p43 = por %p41, %p42
    %p44 = scmp.ne.s32.totalorder %s33, %s36
    %p45 = scmp.eq.s32.totalorder %s14, 1
    %p46 = por %p44, %p45
    %p47 = scmp.ne.s32.totalorder %s36, %s37
    %p48 = scmp.eq.s32.totalorder %s14, 0
    %p49 = por %p47, %p48
    %p50 = scmp.ne.s32.totalorder %s36, %s37
    %p51 = scmp.eq.s32.totalorder %s15, 1
    %p52 = por %p50, %p51
    %p54 = scmp.ne.s32.totalorder %s37, %s53
    %p55 = scmp.eq.s32.totalorder %s15, 0
    %p56 = por %p54, %p55
    %s58 = sadd.s32 %s57, 1
    %p61 = scmp.eq.s32.totalorder %s9, 1
    %p62 = scmp.ne.s32.totalorder %s57, %s59
    %p63 = scmp.eq.s32.totalorder %s9, 0
    %p64 = por %p62, %p63
    %p65 = scmp.ne.s32.totalorder %s57, %s59
    %p66 = scmp.eq.s32.totalorder %s14, 1
    %p67 = por %p65, %p66
    %p68 = scmp.ne.s32.totalorder %s59, %s60
    %p69 = scmp.eq.s32.totalorder %s14, 0
    %p70 = por %p68, %p69
    %p71 = scmp.ne.s32.totalorder %s59, %s60
    %p72 = scmp.eq.s32.totalorder %s15, 1
    %p73 = por %p71, %p72
    %p75 = scmp.ne.s32.totalorder %s60, %s74
    %p76 = scmp.eq.s32.totalorder %s15, 0
    %p77 = por %p75, %p76
    %s79 = sadd.s32 %s78, 1
    %p82 = scmp.eq.s32.totalorder %s9, 1
    %p83 = scmp.ne.s32.totalorder %s78, %s80
    %p84 = scmp.eq.s32.totalorder %s9, 0
    %p85 = por %p83, %p84
    %p86 = scmp.ne.s32.totalorder %s78, %s80
    %p87 = scmp.eq.s32.totalorder %s14, 1
    %p88 = por %p86, %p87
    %p89 = scmp.ne.s32.totalorder %s80, %s81
    %p90 = scmp.eq.s32.totalorder %s14, 0
    %p91 = por %p89, %p90
    %p92 = scmp.ne.s32.totalorder %s80, %s81
    %p93 = scmp.eq.s32.totalorder %s15, 1
    %p94 = por %p92, %p93
    %p96 = scmp.ne.s32.totalorder %s81, %s95
    %p97 = scmp.eq.s32.totalorder %s15, 0
    %p98 = por %p96, %p97
    %s99 = ssub.s32 %s16, %s28
    %s100 = ssub.s32 %s17, %s24
    %s101 = sor.u32 %s99, %s100
    %p102 = scmp.eq.s32.totalorder %s101, 0
    %s104 = sadd.s32 %s103, 1
    %s105 = scalar_select %p102, %s103, %s104
    %p108 = pneg %p102
    %p109 = scmp.eq.s32.totalorder %s9, 1
    %p110 = por %p108, %p109
    %p111 = scmp.ne.s32.totalorder %s103, %s106
    %p112 = scmp.eq.s32.totalorder %s9, 0
    %p113 = por %p111, %p112
    %p114 = scmp.ne.s32.totalorder %s103, %s106
    %p115 = scmp.eq.s32.totalorder %s14, 1
    %p116 = por %p114, %p115
    %p117 = scmp.ne.s32.totalorder %s106, %s107
    %p118 = scmp.eq.s32.totalorder %s14, 0
    %p119 = por %p117, %p118
    %p120 = scmp.ne.s32.totalorder %s106, %s107
    %p121 = scmp.eq.s32.totalorder %s15, 1
    %p122 = por %p120, %p121
    %p124 = scmp.ne.s32.totalorder %s107, %s123
    %p125 = scmp.eq.s32.totalorder %s15, 0
    %p126 = por %p124, %p125
    %p127 = scmp.le.s32.totalorder 1, %s9
    %p128 = scmp.lt.s32.totalorder %s9, 3
    %p129 = pnand %p127, %p128
    %p130 = pneg %p129
    // Predicated region
    $region9: #{tpu_custom_call.1} parent=5 // pred_check
      _
    $region10: #{tpu_custom_call.1} parent=5 // pred_check_branch
      %132 = sbr.rel (%p129) target = $region12
    $region11: #{tpu_custom_call.1} parent=5 // pred_region
      %s133 = ssub.s32 %s9, 1
      // Predicated region
      $region13: #{tpu_custom_call.1} parent=11 // pred_check
        %p134 = pneg %p70
      $region14: #{tpu_custom_call.1} parent=11 // pred_check_branch
        %136 = sbr.rel (%p134) target = $region16
      $region15: #{tpu_custom_call.1} parent=11 // pred_region
        _
      $region16: #{tpu_custom_call.1} parent=11 // pred_fallthru
        _
      // Predicated region
      $region17: #{tpu_custom_call.1} parent=11 // pred_check
        %p137 = pneg %p91
      $region18: #{tpu_custom_call.1} parent=11 // pred_check_branch
        %139 = sbr.rel (%p137) target = $region20
      $region19: #{tpu_custom_call.1} parent=11 // pred_region
        _
      $region20: #{tpu_custom_call.1} parent=11 // pred_fallthru
        _
    $region12: #{tpu_custom_call.1} parent=5 // pred_fallthru
      _
    %p140 = scmp.lt.s32.totalorder %s9, 2
    // Predicated region
    $region21: #{tpu_custom_call.1} parent=5 // pred_check
      %p141 = pneg %p140
    $region22: #{tpu_custom_call.1} parent=5 // pred_check_branch
      %143 = sbr.rel (%p141) target = $region24
    $region23: #{tpu_custom_call.1} parent=5 // pred_region
      // Predicated region
      $region25: #{tpu_custom_call.1} parent=23 // pred_check
        %p144 = pneg %p43
      $region26: #{tpu_custom_call.1} parent=23 // pred_check_branch
        %146 = sbr.rel (%p144) target = $region28
      $region27: #{tpu_custom_call.1} parent=23 // pred_region
        %s147 = smul.u32 2, %s17
        %p148 = scmp.lt.s32.totalorder %s16, 1
        %s149 = scalar_select %p148, %s16, 1
        %p150 = scmp.lt.s32.totalorder %s147, 1
        %s151 = scalar_select %p150, %s147, 1
        %s152 = smul.addr %s149, 4
        %s153 = sadd.s32 %s151, %s152
        %s154 = smul.addr %s153, 8
        %s155 = scalar_lea.vmem %s0, %s154
        %s156 = smul.u32 2, %s17
      $region28: #{tpu_custom_call.1} parent=23 // pred_fallthru
        _
    $region24: #{tpu_custom_call.1} parent=5 // pred_fallthru
      _
    %p157 = scmp.le.s32.totalorder 1, %s9
    %p158 = scmp.lt.s32.totalorder %s9, 3
    %p159 = pnand %p157, %p158
    %p160 = pneg %p159
    // Predicated region
    $region29: #{tpu_custom_call.1} parent=5 // pred_check
      _
    $region30: #{tpu_custom_call.1} parent=5 // pred_check_branch
      %162 = sbr.rel (%p159) target = $region32
    $region31: #{tpu_custom_call.1} parent=5 // pred_region
      %s163 = ssub.s32 %s9, 1
      %s164 = smul.u32 2, %s19
      %p165 = scmp.lt.s32.totalorder %s18, 1
      %s166 = scalar_select %p165, %s18, 1
      %p167 = scmp.lt.s32.totalorder %s164, 1
      %s168 = scalar_select %p167, %s164, 1
      %s169 = smul.addr %s166, 4
      %s170 = sadd.s32 %s168, %s169
      %s171 = smul.addr %s170, 8
      %s172 = scalar_lea.vmem %s0, %s171
      %p173 = pneg %p49
      %p174 = pneg %p46
      %p175 = pneg %p70
      %p176 = pneg %p67
      %p177 = pneg %p91
      %p178 = pneg %p88
      %p179 = pneg %p119
      %p180 = pneg %p116
      %s181 = smul.u32 2, %s19
      %p182 = scmp.lt.s32.totalorder %s18, 1
      %s183 = scalar_select %p182, %s18, 1
      %p184 = scmp.lt.s32.totalorder %s181, 1
      %s185 = scalar_select %p184, %s181, 1
      %s186 = smul.addr %s183, 2
      %s187 = sadd.s32 %s185, %s186
      %s188 = smul.addr %s187, 4
      %s189 = scalar_lea.vmem %s3, %s188
      %s190 = smul.u32 2, %s19
      %p191 = scmp.lt.s32.totalorder %s18, 1
      %s192 = scalar_select %p191, %s18, 1
      %p193 = scmp.lt.s32.totalorder %s190, 1
      %s194 = scalar_select %p193, %s190, 1
      %s195 = smul.addr %s192, 4
      %s196 = sadd.s32 %s194, %s195
      %s197 = smul.addr %s196, 8
      %s198 = scalar_lea.vmem %s0, %s197
      %s199 = smul.u32 2, %s19
      %s200 = smul.u32 2, %s19
      %p201 = scmp.lt.s32.totalorder %s18, 1
      %s202 = scalar_select %p201, %s18, 1
      %p203 = scmp.lt.s32.totalorder %s200, 1
      %s204 = scalar_select %p203, %s200, 1
      %s205 = smul.addr %s202, 2
      %s206 = sadd.s32 %s204, %s205
      %s207 = smul.addr %s206, 4
      %s208 = scalar_lea.vmem %s3, %s207
      %s209 = smul.u32 2, %s19
      %v210 = vld [vmem:[%s1] sm:$0x7]
      %v211 = vld [vmem:[%s198] sm:$0xff]
      %v212 = vld [vmem:[%s198 + $0x8] sm:$0xff]
      %v213 = vld [vmem:[%s198 + $0x10] sm:$0x1f]
      %v214 = vld [vmem:[%s198 + $0x18] sm:$0x1f]
      %v215 = vld [vmem:[%s2] sm:$0x7]
      %217 = vset.pattern.permute.xlu0 0
      %218 = vperm.xlu0 %217, %v215
      %v219 = vpop.permute.xlu0 %218
      %vm221 = vcmask 105472
      %v223 = vsel %vm221, %v210, 0
      %vm225 = vcmask 1044480
      %v227 = vsel %vm225, %v213, 0
      %v230 = vsel %vm225, %v214, 0
      %232 = vmatprep.subr.mxu0 %v212
      %233 = vmatpush1.msra.mxu0 %v211
      %234 = vmatprep.subr.mxu0 %v230
      %235 = vmatpush1.msra.mxu0 %v227
      %236 = vmatprep.subr.mxu0 0.0
      %237 = vmatpush1.msra.mxu0 0.0
      %238 = vmatprep.subr.mxu0 0.0
      %239 = vmatpush1.msra.mxu0 0.0
      %240 = vmatprep.subr.mxu0 0.0
      %241 = vmatpush1.msra.mxu0 0.0
      %242 = vmatprep.subr.mxu0 0.0
      %243 = vmatpush1.msra.mxu0 0.0
      %244 = vmatprep.subr.mxu0 0.0
      %245 = vmatpush1.msra.mxu0 0.0
      %246 = vmatprep.subr.mxu0 0.0
      %247 = vmatpush1.msra.mxu0 0.0
      %248 = vmatprep.subr.mxu0 0.0
      %249 = vmatpush1.msra.mxu0 0.0
      %250 = vmatprep.subr.mxu0 0.0
      %251 = vmatpush1.msra.mxu0 0.0
      %252 = vmatprep.subr.mxu0 0.0
      %253 = vmatpush1.msra.mxu0 0.0
      %254 = vmatprep.subr.mxu0 0.0
      %255 = vmatpush1.msra.mxu0 0.0
      %256 = vmatprep.subr.mxu0 0.0
      %257 = vmatpush1.msra.mxu0 0.0
      %258 = vmatprep.subr.mxu0 0.0
      %259 = vmatpush1.msra.mxu0 0.0
      %260 = vmatprep.subr.mxu0 0.0
      %261 = vmatpush1.msra.mxu0 0.0
      %262 = vmatprep.subr.mxu0 0.0
      %263 = vmatpush1.msra.mxu0 0.0
      %264 = vmatprep.subr.mxu0 0.0
      %265 = vmatpush1.msra.mxu0 0.0
      %266 = vmatprep.subr.mxu0 0.0
      %267 = vmatpush1.msra.mxu0 0.0
      %268 = vmatprep.subr.mxu0 0.0
      %269 = vmatpush1.msra.mxu0 0.0
      %270 = vmatprep.subr.mxu0 0.0
      %271 = vmatpush1.msra.mxu0 0.0
      %272 = vmatprep.subr.mxu0 0.0
      %273 = vmatpush1.msra.mxu0 0.0
      %274 = vmatprep.subr.mxu0 0.0
      %275 = vmatpush1.msra.mxu0 0.0
      %276 = vmatprep.subr.mxu0 0.0
      %277 = vmatpush1.msra.mxu0 0.0
      %278 = vmatprep.subr.mxu0 0.0
      %279 = vmatpush1.msra.mxu0 0.0
      %280 = vmatprep.subr.mxu0 0.0
      %281 = vmatpush1.msra.mxu0 0.0
      %282 = vmatprep.subr.mxu0 0.0
      %283 = vmatpush1.msra.mxu0 0.0
      %284 = vmatprep.subr.mxu0 0.0
      %285 = vmatpush1.msra.mxu0 0.0
      %286 = vmatprep.subr.mxu0 0.0
      %287 = vmatpush1.msra.mxu0 0.0
      %288 = vmatprep.subr.mxu0 0.0
      %289 = vmatpush1.msra.mxu0 0.0
      %290 = vmatprep.subr.mxu0 0.0
      %291 = vmatpush1.msra.mxu0 0.0
      %292 = vmatprep.subr.mxu0 0.0
      %293 = vmatpush1.msra.mxu0 0.0
      %294 = vmatprep.subr.mxu0 0.0
      %295 = vmatpush1.msra.mxu0 0.0
      %296 = vmatprep.mubr.f32.mxu0 0.0
      %297 = vmatmul.mubr.f32.gmra.mrb[0].mxu0 %v223
      %v298 = vpop.f32.mrb[0].mxu0
      %v299 = vadd.f32 %v219, %v298
      %v300 = vpop.f32.mrb[0].mxu0
      %v301 = vadd.f32 %v219, %v300
      %302 = vdwg.mxu0
      %v305 = vcombine.low %v299, %v301
      %307 = vst [vmem:[%s208] sm:$0x77] %v305
      %s308 = smul.u32 2, %s19
      %p309 = scmp.lt.s32.totalorder %s18, 1
      %s310 = scalar_select %p309, %s18, 1
      %p311 = scmp.lt.s32.totalorder %s308, 1
      %s312 = scalar_select %p311, %s308, 1
      %s313 = smul.addr %s310, 2
      %s314 = sadd.s32 %s312, %s313
      %s315 = smul.addr %s314, 4
      %s316 = scalar_lea.vmem %s3, %s315
      // Predicated region
      $region33: #{tpu_custom_call.1} parent=31 // pred_check
        %p317 = pneg %p116
      $region34: #{tpu_custom_call.1} parent=31 // pred_check_branch
        %319 = sbr.rel (%p317) target = $region36
      $region35: #{tpu_custom_call.1} parent=31 // pred_region
        %s320 = smul.u32 2, %s19
      $region36: #{tpu_custom_call.1} parent=31 // pred_fallthru
        _
    $region32: #{tpu_custom_call.1} parent=5 // pred_fallthru
      _
    %p321 = scmp.le.s32.totalorder 2, %s9
    // Predicated region
    $region37: #{tpu_custom_call.1} parent=5 // pred_check
      %p322 = pneg %p321
    $region38: #{tpu_custom_call.1} parent=5 // pred_check_branch
      %324 = sbr.rel (%p322) target = $region40
    $region39: #{tpu_custom_call.1} parent=5 // pred_region
      %s325 = ssub.s32 %s9, 2
      // Predicated region
      $region41: #{tpu_custom_call.1} parent=39 // pred_check
        %p326 = pneg %p122
      $region42: #{tpu_custom_call.1} parent=39 // pred_check_branch
        %328 = sbr.rel (%p326) target = $region44
      $region43: #{tpu_custom_call.1} parent=39 // pred_region
        %s329 = smul.u32 2, %s21
        %p330 = scmp.lt.s32.totalorder %s20, 1
        %s331 = scalar_select %p330, %s20, 1
        %p332 = scmp.lt.s32.totalorder %s329, 1
        %s333 = scalar_select %p332, %s329, 1
        %s334 = smul.addr %s331, 2
        %s335 = sadd.s32 %s333, %s334
        %s336 = smul.addr %s335, 4
        %s337 = scalar_lea.vmem %s3, %s336
      $region44: #{tpu_custom_call.1} parent=39 // pred_fallthru
        _
    $region40: #{tpu_custom_call.1} parent=5 // pred_fallthru
      _
  $region6: #{tpu_custom_call.1} parent=0 // loop_footer
    %s13 = sadd.s32 1, %s9
  $region7: #{tpu_custom_call.1} parent=0 // loop_footer_branch
    %8 = sbr.rel target = $region3
  $region8: #{tpu_custom_call.1} parent=0 // loop_exit
    _

</llo_original>
